<compile_context>
chip_gen: v7x
topology: tpu7x:2x2x1
jax: 0.10.0
libtpu: 0.0.40
codegen_flags: <defaults>
</compile_context>

<pallas_src>
from functools import partial

import jax
import jax.numpy as jnp
from jax.experimental import pallas as pl
from jax.experimental.pallas import tpu as pltpu

EPS = 1e-5  # torch.nn.BatchNorm2d default


def _round_up(a, b):
    return ((a + b - 1) // b) * b


# --------------------------------------------------------------------------- #
# Kernels
# --------------------------------------------------------------------------- #
def _cbn_single_kernel(x_ref, gamma_ref, beta_ref, o_ref, *, inv_count):
    """Single-pass path. x_ref/o_ref: (N, tc, L); gamma_ref/beta_ref: (N, tc, 1)."""
    x = x_ref[...].astype(jnp.float32)                         # (N, tc, L)

    # Sum over batch first (pure VPU vreg adds), then one cross-lane (XLU)
    # reduce over the spatial axis. Two-pass (diff) variance for robustness;
    # biased variance matches torch's training-mode normalization.
    ps = jnp.sum(x, axis=0, keepdims=True)                     # (1, tc, L)
    mean = jnp.sum(ps, axis=2, keepdims=True) * inv_count      # (1, tc, 1)
    d = x - mean
    pv = jnp.sum(d * d, axis=0, keepdims=True)                 # (1, tc, L)
    var = jnp.sum(pv, axis=2, keepdims=True) * inv_count       # (1, tc, 1)
    inv_std = jax.lax.rsqrt(var + EPS)

    # Fold BN + conditional affine into a single x*scale + shift pass.
    scale = gamma_ref[...].astype(jnp.float32) * inv_std       # (N, tc, 1)
    shift = beta_ref[...].astype(jnp.float32) - mean * scale   # (N, tc, 1)

    # Re-read x_ref (VMEM vld, no extra HBM traffic) so the f32 copy / diff
    # above are dead before the store -- keeps live VMEM/vreg footprint small.
    o_ref[...] = (x_ref[...].astype(jnp.float32) * scale + shift).astype(o_ref.dtype)


def _cbn_twopass_kernel(x_ref, gamma_ref, beta_ref, o_ref,
                        sum_ref, sumsq_ref, scale_ref, shift_ref,
                        *, tl, spatial, inv_count):
    """Fallback for huge N*H*W. Grid (c_tiles, 2, l_tiles).

    Sweep s=0 accumulates per-channel sum / sum-of-squares over spatial tiles;
    sweep s=1 re-reads the same tiles and writes the normalized output.
    """
    s = pl.program_id(1)   # 0: stats sweep, 1: normalize sweep
    k = pl.program_id(2)   # spatial tile within the sweep

    @pl.when((s == 0) & (k == 0))
    def _init():
        sum_ref[...] = jnp.zeros_like(sum_ref)
        sumsq_ref[...] = jnp.zeros_like(sumsq_ref)

    @pl.when(s == 0)
    def _accumulate():
        x = x_ref[...].astype(jnp.float32)                     # (N, tc, tl)
        if spatial % tl != 0:
            # Last spatial tile is padded with garbage: mask it out of the stats.
            lane = jax.lax.broadcasted_iota(jnp.int32, x.shape, 2)
            x = jnp.where(k * tl + lane < spatial, x, 0.0)
        sum_ref[...] += jnp.sum(jnp.sum(x, axis=0, keepdims=True),
                                axis=2, keepdims=True)
        sumsq_ref[...] += jnp.sum(jnp.sum(x * x, axis=0, keepdims=True),
                                  axis=2, keepdims=True)

    @pl.when((s == 1) & (k == 0))
    def _finalize():
        mean = sum_ref[...] * inv_count                        # (1, tc, 1)
        var = jnp.maximum(sumsq_ref[...] * inv_count - mean * mean, 0.0)
        inv_std = jax.lax.rsqrt(var + EPS)
        scale = gamma_ref[...].astype(jnp.float32) * inv_std   # (N, tc, 1)
        scale_ref[...] = scale
        shift_ref[...] = beta_ref[...].astype(jnp.float32) - mean * scale

    @pl.when(s == 1)
    def _normalize():
        o_ref[...] = (x_ref[...].astype(jnp.float32) * scale_ref[...]
                      + shift_ref[...]).astype(o_ref.dtype)


# --------------------------------------------------------------------------- #
# Tile selection
# --------------------------------------------------------------------------- #
def _pick_tiles(N, C, L, itemsize, sizing_budget=None):
    """Returns (mode, channel_tile, spatial_tile, vmem_limit_bytes)."""
    try:
        vmem_cap = int(pltpu.get_tpu_info().vmem_capacity_bytes)
    except Exception:
        vmem_cap = 64 << 20  # conservative (v7x-sized) fallback
    # This pallas_call is the only VMEM consumer -> leave only ~25% headroom.
    vmem_limit = min((vmem_cap * 3) // 4, 96 << 20)
    budget = vmem_limit if sizing_budget is None else sizing_budget

    # Per resident x element: 2x-in + 2x-out double buffers (4*itemsize) plus
    # the live f32 working copy + diff/square temporaries (~8 B).
    bytes_per_elem = 4 * itemsize + 8

    min_tc = C if C < 8 else 8
    tc_fit = budget // (N * L * bytes_per_elem)

    if tc_fit >= min_tc:
        # Single-pass: whole (N, tc, L) slab resident per grid step.
        tc = C if tc_fit >= C else (tc_fit // 8) * 8
        if C >= 16:
            # Keep >= ~4 channel-grid steps: megacore (v7x) shards the
            # "parallel" axis and the DMA/compute pipeline has work to overlap.
            tc = min(tc, max(8, _round_up(pl.cdiv(C, 4), 8)))
        return "single", int(tc), int(L), int(vmem_limit)

    # Huge N*H*W: also tile the spatial axis and make two sweeps over it
    # (x is read twice -- still HBM-roofline-bound, and it keeps tc=8 feasible
    # on v7x's 64 MiB VMEM instead of a compile-time OOM).
    tc = min_tc
    tl = (budget // (N * tc * bytes_per_elem)) // 128 * 128
    tl = max(128, min(tl, _round_up(L, 128)))
    return "two_pass", int(tc), int(tl), int(vmem_limit)


# --------------------------------------------------------------------------- #
# pallas_call dispatch
# --------------------------------------------------------------------------- #
def _cbn_pallas(x_flat, gamma3, beta3, sizing_budget=None):
    N, C, L = x_flat.shape
    itemsize = jnp.dtype(x_flat.dtype).itemsize
    mode, tc, tl, vmem_limit = _pick_tiles(N, C, L, itemsize, sizing_budget)
    c_tiles = pl.cdiv(C, tc)
    param_bytes = 2 * N * C * jnp.dtype(gamma3.dtype).itemsize

    # NOTE: when C % tc != 0, the padded channel rows of the last block compute
    # stats/affine on garbage -- those rows are dropped on writeback, valid
    # channels are unaffected (stats never mix across channels).

    if mode == "single":
        kernel = partial(_cbn_single_kernel, inv_count=1.0 / float(N * L))
        return pl.pallas_call(
            kernel,
            out_shape=jax.ShapeDtypeStruct((N, C, L), x_flat.dtype),
            grid=(c_tiles,),
            in_specs=[
                pl.BlockSpec((N, tc, L), lambda c: (0, c, 0)),
                pl.BlockSpec((N, tc, 1), lambda c: (0, c, 0)),
                pl.BlockSpec((N, tc, 1), lambda c: (0, c, 0)),
            ],
            out_specs=pl.BlockSpec((N, tc, L), lambda c: (0, c, 0)),
            compiler_params=pltpu.CompilerParams(
                dimension_semantics=("parallel",),
                vmem_limit_bytes=vmem_limit),
            cost_estimate=pl.CostEstimate(
                flops=6 * N * C * L,
                transcendentals=C,
                bytes_accessed=2 * N * C * L * itemsize + param_bytes),
        )(x_flat, gamma3, beta3)

    l_tiles = pl.cdiv(L, tl)
    kernel = partial(_cbn_twopass_kernel, tl=tl, spatial=L,
                     inv_count=1.0 / float(N * L))
    return pl.pallas_call(
        kernel,
        out_shape=jax.ShapeDtypeStruct((N, C, L), x_flat.dtype),
        grid=(c_tiles, 2, l_tiles),
        in_specs=[
            pl.BlockSpec((N, tc, tl), lambda c, s, k: (0, c, k)),
            pl.BlockSpec((N, tc, 1), lambda c, s, k: (0, c, 0)),
            pl.BlockSpec((N, tc, 1), lambda c, s, k: (0, c, 0)),
        ],
        # Hold output block (c, 0) during the stats sweep (nothing is written
        # back until the normalize sweep fills it), then walk the spatial tiles.
        out_specs=pl.BlockSpec((N, tc, tl), lambda c, s, k: (0, c, k * s)),
        scratch_shapes=[
            pltpu.VMEM((1, tc, 1), jnp.float32),   # per-channel sum
            pltpu.VMEM((1, tc, 1), jnp.float32),   # per-channel sum of squares
            pltpu.VMEM((N, tc, 1), jnp.float32),   # folded scale
            pltpu.VMEM((N, tc, 1), jnp.float32),   # folded shift
        ],
        compiler_params=pltpu.CompilerParams(
            dimension_semantics=("parallel", "arbitrary", "arbitrary"),
            vmem_limit_bytes=vmem_limit),
        cost_estimate=pl.CostEstimate(
            flops=7 * N * C * L,
            transcendentals=C,
            bytes_accessed=3 * N * C * L * itemsize + param_bytes),
    )(x_flat, gamma3, beta3)


@partial(jax.jit, static_argnames=("vmem_budget_override",))
def conditional_batch_norm_2d(x, y, embed_weight, vmem_budget_override=None):
    """
    Args:
        x: (N, C, H, W) feature map (NCHW, like PyTorch).
        y: (N,) int class labels.
        embed_weight: (num_classes, 2*C) embedding table.
        vmem_budget_override: optional tile-sizing budget in bytes (testing knob
            to force the two-sweep fallback path).

    Returns:
        (N, C, H, W) output feature map.
    """
    N, C, H, W = x.shape
    L = H * W

    # Glue (plain XLA): embedding gather + chunk into per-sample gamma / beta.
    emb = embed_weight[y]                      # (N, 2C)
    gamma3 = emb[:, :C][:, :, None]            # (N, C, 1)
    beta3 = emb[:, C:][:, :, None]             # (N, C, 1)

    # Free view of NCHW -> (N, C, H*W): spatial axis stays lane-dense.
    # NOTE: if H*W is far from a multiple of 128 (e.g. 7x7 maps) every vector
    # op / store runs lane-masked at ~L/(128*ceil(L/128)) efficiency.
    # TODO(synk): for such shapes a one-time relayout to (C, N*H*W) would pay off.
    x_flat = x.reshape(N, C, L)

    out_flat = _cbn_pallas(x_flat, gamma3, beta3, vmem_budget_override)
    return out_flat.reshape(N, C, H, W)

    # TODO(synk): running_mean / running_var buffer updates (BatchNorm2d training
    # side effect) are intentionally not produced; forward output matches torch.


def _reference(x, y, embed_weight):
    """Pure-JAX reference mirroring the PyTorch forward (training-mode BN)."""
    N, C, H, W = x.shape
    xf = x.astype(jnp.float32)
    mean = jnp.mean(xf, axis=(0, 2, 3), keepdims=True)
    var = jnp.mean((xf - mean) ** 2, axis=(0, 2, 3), keepdims=True)
    x_hat = (xf - mean) * jax.lax.rsqrt(var + EPS)
    emb = embed_weight[y]
    gamma = emb[:, :C].reshape(N, C, 1, 1)
    beta = emb[:, C:].reshape(N, C, 1, 1)
    return (gamma * x_hat + beta).astype(x.dtype)


if __name__ == "__main__":
    def make_inputs(key, N, C, H, W, num_classes):
        k_x, k_y, k_emb = jax.random.split(key, 3)
        # Deterministic init matching the module: gamma ~ N(1, 0.02), beta = 0.
        gamma_part = 1.0 + 0.02 * jax.random.normal(
            k_emb, (num_classes, C), dtype=jnp.float32)
        beta_part = jnp.zeros((num_classes, C), dtype=jnp.float32)
        embed_weight = jnp.concatenate([gamma_part, beta_part], axis=1)
        x = jax.random.normal(k_x, (N, C, H, W), dtype=jnp.float32)
        y = jax.random.randint(k_y, (N,), 0, num_classes, dtype=jnp.int32)
        return x, y, embed_weight

    # 1) Module-sized example (batch=2, channels=4, 16x16): single-pass path.
    x, y, w = make_inputs(jax.random.PRNGKey(0), 2, 4, 16, 16, 10)
    out = jax.block_until_ready(conditional_batch_norm_2d(x, y, w))
    ref = _reference(x, y, w)
    assert out.shape == x.shape
    assert jnp.allclose(out, ref, atol=1e-5, rtol=1e-5), "single-pass mismatch"

    # 2) Multi-channel-tile single-pass path (C=20 -> tc=8, partial last tile).
    x2, y2, w2 = make_inputs(jax.random.PRNGKey(1), 2, 20, 32, 32, 10)
    out2 = jax.block_until_ready(conditional_batch_norm_2d(x2, y2, w2))
    ref2 = _reference(x2, y2, w2)
    assert jnp.allclose(out2, ref2, atol=1e-4, rtol=1e-4), "tiled single-pass mismatch"

    # 3) Force the two-sweep (stats/normalize) fallback with a tiny sizing
    #    budget: exercises spatial tiling, lane masking and the scratch path.
    out3 = jax.block_until_ready(
        conditional_batch_norm_2d(x2, y2, w2, vmem_budget_override=256 * 1024))
    assert jnp.allclose(out3, ref2, atol=1e-4, rtol=1e-4), "two-pass mismatch"

    print("KERNEL_OK")
</pallas_src>

<mosaic_0001>
module attributes {stable_mosaic.version = 11 : i64} {
  func.func @_cbn_single_kernel(%arg0: i32, %arg1: memref<2x4x256xf32, #tpu.memory_space<vmem>>, %arg2: memref<2x4x1xf32, #tpu.memory_space<vmem>>, %arg3: memref<2x4x1xf32, #tpu.memory_space<vmem>>, %arg4: memref<2x4x256xf32, #tpu.memory_space<vmem>>) attributes {dimension_semantics = [#tpu.dimension_semantics<parallel>], iteration_bounds = array<i64: 1>, scalar_prefetch = 0 : i64, scratch_operands = 0 : i64, tpu.core_type = #tpu.core_type<tc>, window_params = [{transform_indices = @transform_0, window_bounds = array<i64: 2, 4, 256>}, {transform_indices = @transform_1, window_bounds = array<i64: 2, 4, 1>}, {transform_indices = @transform_2, window_bounds = array<i64: 2, 4, 1>}, {transform_indices = @transform_3, window_bounds = array<i64: 2, 4, 256>}]} {
    %c0 = arith.constant 0 : index
    %c0_0 = arith.constant 0 : index
    %c0_1 = arith.constant 0 : index
    %0 = vector.load %arg1[%c0, %c0_0, %c0_1] : memref<2x4x256xf32, #tpu.memory_space<vmem>>, vector<2x4x256xf32>
    %cst = arith.constant dense<0.000000e+00> : vector<4x256xf32>
    %1 = vector.multi_reduction <add>, %0, %cst [0] : vector<2x4x256xf32> to vector<4x256xf32>
    %2 = vector.shape_cast %1 : vector<4x256xf32> to vector<1x4x256xf32>
    %cst_2 = arith.constant dense<0.000000e+00> : vector<1x4xf32>
    %3 = vector.multi_reduction <add>, %2, %cst_2 [2] : vector<1x4x256xf32> to vector<1x4xf32>
    %4 = vector.shape_cast %3 : vector<1x4xf32> to vector<1x4x1xf32>
    %cst_3 = arith.constant 0.001953125 : f32
    %5 = vector.broadcast %cst_3 : f32 to vector<1x4x1xf32>
    %6 = arith.mulf %4, %5 : vector<1x4x1xf32>
    %7 = vector.broadcast %6 : vector<1x4x1xf32> to vector<2x4x256xf32>
    %8 = arith.subf %0, %7 : vector<2x4x256xf32>
    %9 = arith.mulf %8, %8 : vector<2x4x256xf32>
    %cst_4 = arith.constant dense<0.000000e+00> : vector<4x256xf32>
    %10 = vector.multi_reduction <add>, %9, %cst_4 [0] : vector<2x4x256xf32> to vector<4x256xf32>
    %11 = vector.shape_cast %10 : vector<4x256xf32> to vector<1x4x256xf32>
    %cst_5 = arith.constant dense<0.000000e+00> : vector<1x4xf32>
    %12 = vector.multi_reduction <add>, %11, %cst_5 [2] : vector<1x4x256xf32> to vector<1x4xf32>
    %13 = vector.shape_cast %12 : vector<1x4xf32> to vector<1x4x1xf32>
    %cst_6 = arith.constant 0.001953125 : f32
    %14 = vector.broadcast %cst_6 : f32 to vector<1x4x1xf32>
    %15 = arith.mulf %13, %14 : vector<1x4x1xf32>
    %cst_7 = arith.constant 9.99999974E-6 : f32
    %16 = vector.broadcast %cst_7 : f32 to vector<1x4x1xf32>
    %17 = arith.addf %15, %16 : vector<1x4x1xf32>
    %18 = math.rsqrt %17 : vector<1x4x1xf32>
    %c0_8 = arith.constant 0 : index
    %c0_9 = arith.constant 0 : index
    %c0_10 = arith.constant 0 : index
    %19 = vector.load %arg2[%c0_8, %c0_9, %c0_10] : memref<2x4x1xf32, #tpu.memory_space<vmem>>, vector<2x4x1xf32>
    %20 = vector.broadcast %18 : vector<1x4x1xf32> to vector<2x4x1xf32>
    %21 = arith.mulf %19, %20 : vector<2x4x1xf32>
    %c0_11 = arith.constant 0 : index
    %c0_12 = arith.constant 0 : index
    %c0_13 = arith.constant 0 : index
    %22 = vector.load %arg3[%c0_11, %c0_12, %c0_13] : memref<2x4x1xf32, #tpu.memory_space<vmem>>, vector<2x4x1xf32>
    %23 = vector.broadcast %6 : vector<1x4x1xf32> to vector<2x4x1xf32>
    %24 = arith.mulf %23, %21 : vector<2x4x1xf32>
    %25 = arith.subf %22, %24 : vector<2x4x1xf32>
    %c0_14 = arith.constant 0 : index
    %c0_15 = arith.constant 0 : index
    %c0_16 = arith.constant 0 : index
    %26 = vector.load %arg1[%c0_14, %c0_15, %c0_16] : memref<2x4x256xf32, #tpu.memory_space<vmem>>, vector<2x4x256xf32>
    %27 = vector.broadcast %21 : vector<2x4x1xf32> to vector<2x4x256xf32>
    %28 = arith.mulf %26, %27 : vector<2x4x256xf32>
    %29 = vector.broadcast %25 : vector<2x4x1xf32> to vector<2x4x256xf32>
    %30 = arith.addf %28, %29 : vector<2x4x256xf32>
    %c0_17 = arith.constant 0 : index
    %c0_18 = arith.constant 0 : index
    %c0_19 = arith.constant 0 : index
    %31 = vector.load %arg4[%c0_17, %c0_18, %c0_19] : memref<2x4x256xf32, #tpu.memory_space<vmem>>, vector<2x4x256xf32>
    tpu.vector_store %arg4[%c0_17, %c0_18, %c0_19], %30 {strides = array<i32>} : memref<2x4x256xf32, #tpu.memory_space<vmem>>, vector<2x4x256xf32>,
    return
  }
  func.func @transform_0(%arg0: i32) -> (i32, i32, i32) {
    %c0_i32 = arith.constant 0 : i32
    %c0_i32_0 = arith.constant 0 : i32
    %c0_i32_1 = arith.constant 0 : i32
    return %c0_i32, %arg0, %c0_i32_0 : i32, i32, i32
  }
  func.func @transform_1(%arg0: i32) -> (i32, i32, i32) {
    %c0_i32 = arith.constant 0 : i32
    %c0_i32_0 = arith.constant 0 : i32
    %c0_i32_1 = arith.constant 0 : i32
    return %c0_i32, %arg0, %c0_i32_0 : i32, i32, i32
  }
  func.func @transform_2(%arg0: i32) -> (i32, i32, i32) {
    %c0_i32 = arith.constant 0 : i32
    %c0_i32_0 = arith.constant 0 : i32
    %c0_i32_1 = arith.constant 0 : i32
    return %c0_i32, %arg0, %c0_i32_0 : i32, i32, i32
  }
  func.func @transform_3(%arg0: i32) -> (i32, i32, i32) {
    %c0_i32 = arith.constant 0 : i32
    %c0_i32_0 = arith.constant 0 : i32
    %c0_i32_1 = arith.constant 0 : i32
    return %c0_i32, %arg0, %c0_i32_0 : i32, i32, i32
  }
}

</mosaic_0001>

<llo_original>
// kernel: conditional_batch_norm_2d.1
$region0: #{conditional_batch_norm_2d.1}
  #allocation0 [shape = 'u32[]', space=smem, size = 0x4, offset = 0x4, fixed_abs, tag = 'smem constant byte address 0x4 - core index']
  #allocation1 [shape = 'u32[144,128]{1,0:T(1,128)}', space=vmem, size = 0x12000, scoped, tag = 'internal scratch']
  %s0 = inlined_call_operand.vmem [shape: f32[2,4,256], index: 0, kind: input, shape index: {}]
  %s1 = inlined_call_operand.vmem [shape: f32[2,4,1], index: 1, kind: input, shape index: {}]
  %s2 = inlined_call_operand.vmem [shape: f32[2,4,1], index: 2, kind: input, shape index: {}]
  %s3 = inlined_call_operand.vmem [shape: f32[2,4,256], index: 3, kind: output, shape index: {}]
  %s4 = sld [smem:[#allocation0]]
  $region22: #{conditional_batch_norm_2d.1} parent=0
    _
  %s6 = ssub.s32 1, %s4
  %s7 = scalar_select 0, %s6, %s4
  // Predicated region
  $region2: #{conditional_batch_norm_2d.1} parent=0 // pred_check
    _
  $region3: #{conditional_batch_norm_2d.1} parent=0 // pred_check_branch
    %9 = sbr.rel (0) target = $region5
  $region4: #{conditional_batch_norm_2d.1} parent=0 // pred_region
    _
  $region5: #{conditional_batch_norm_2d.1} parent=0 // pred_fallthru
    _
  // Predicated region
  $region6: #{conditional_batch_norm_2d.1} parent=0 // pred_check
    _
  $region7: #{conditional_batch_norm_2d.1} parent=0 // pred_check_branch
    %11 = sbr.rel (0) target = $region9
  $region8: #{conditional_batch_norm_2d.1} parent=0 // pred_region
    _
  $region9: #{conditional_batch_norm_2d.1} parent=0 // pred_fallthru
    _
  // Predicated region
  $region10: #{conditional_batch_norm_2d.1} parent=0 // pred_check
    _
  $region11: #{conditional_batch_norm_2d.1} parent=0 // pred_check_branch
    %13 = sbr.rel (0) target = $region13
  $region12: #{conditional_batch_norm_2d.1} parent=0 // pred_region
    _
  $region13: #{conditional_batch_norm_2d.1} parent=0 // pred_fallthru
    _
  %v14 = vld [vmem:[%s0] sm:$0xff]
  %v15 = vld [vmem:[%s0 + $0x8] sm:$0xff]
  %v18 = vcombine.high %v14, %v14
  %v19 = vcombine.high %v15, %v15
  %vm22 = vcmask 1043456
  %v23 = vsel %vm22, %v14, 0.0
  %v24 = vsel %vm22, %v15, 0.0
  %v25 = vadd.f32 %v23, %v24
  %v26 = vsel %vm22, %v18, 0.0
  %v27 = vsel %vm22, %v19, 0.0
  %v28 = vadd.f32 %v26, %v27
  %v29 = vsel %vm22, %v25, 0.0
  %v30 = vsel %vm22, %v28, 0.0
  %v31 = vadd.f32 %v29, %v30
  %32 = vadd.xlane.f32.xlu0 %v31
  %v33 = vpop.xlane.xlu0 %32
  %v34 = vmul.f32 %v33, 0.001953125
  %v37 = vunpack.c.l.s4 839922192
  %v38 = vunpack.c.0.s8 %v37
  %v39 = vlaneseq
  %v40 = vshrl.u32 %v39, 7
  %v41 = vsub.s32 %v38, %v40
  %v42 = vrot.slane %v34, %v41
  %v44 = vsub.f32 %v14, %v42
  %v45 = vsub.f32 %v15, %v42
  %v46 = vmul.f32 %v44, %v44
  %v47 = vmul.f32 %v45, %v45
  %v50 = vcombine.high %v46, %v46
  %v51 = vcombine.high %v47, %v47
  %v54 = vsel %vm22, %v46, 0.0
  %v55 = vsel %vm22, %v47, 0.0
  %v56 = vadd.f32 %v54, %v55
  %v57 = vsel %vm22, %v50, 0.0
  %v58 = vsel %vm22, %v51, 0.0
  %v59 = vadd.f32 %v57, %v58
  %v60 = vsel %vm22, %v56, 0.0
  %v61 = vsel %vm22, %v59, 0.0
  %v62 = vadd.f32 %v60, %v61
  %63 = vadd.xlane.f32.xlu0 %v62
  %v64 = vpop.xlane.xlu0 %63
  %v65 = vmul.f32 %v64, 0.001953125
  %v66 = vadd.f32 %v65, 1e-05
  %v67 = vrsqrt.pop %v66
  %v68 = vld [vmem:[%s1] sm:$0xf]
  %v69 = vld [vmem:[%s1 + $0x4] sm:$0xf]
  %v70 = vmul.f32 %v68, %v67
  %v71 = vmul.f32 %v69, %v67
  %v72 = vld [vmem:[%s2] sm:$0xf]
  %v73 = vld [vmem:[%s2 + $0x4] sm:$0xf]
  %v74 = vmul.f32 %v34, %v70
  %v75 = vmul.f32 %v34, %v71
  %v76 = vsub.f32 %v72, %v74
  %v77 = vsub.f32 %v73, %v75
  %79 = vset.pattern.permute.xlu0 0
  %80 = vperm.xlu0 %79, %v70
  %v81 = vpop.permute.xlu0 %80
  %83 = vset.pattern.permute.xlu0 0
  %84 = vperm.xlu0 %83, %v71
  %v85 = vpop.permute.xlu0 %84
  %v87 = vunpack.c.l.s4 839922192
  %v88 = vunpack.c.0.s8 %v87
  %v89 = vlaneseq
  %v90 = vshrl.u32 %v89, 7
  %v91 = vsub.s32 %v88, %v90
  %v92 = vrot.slane %v81, %v91
  %v94 = vunpack.c.l.s4 839922192
  %v95 = vunpack.c.0.s8 %v94
  %v96 = vlaneseq
  %v97 = vshrl.u32 %v96, 7
  %v98 = vsub.s32 %v95, %v97
  %v99 = vrot.slane %v85, %v98
  %v102 = vmul.f32 %v14, %v92
  %v103 = vmul.f32 %v15, %v99
  %105 = vset.pattern.permute.xlu0 0
  %106 = vperm.xlu0 %105, %v76
  %v107 = vpop.permute.xlu0 %106
  %109 = vset.pattern.permute.xlu0 0
  %110 = vperm.xlu0 %109, %v77
  %v111 = vpop.permute.xlu0 %110
  %v113 = vunpack.c.l.s4 839922192
  %v114 = vunpack.c.0.s8 %v113
  %v115 = vlaneseq
  %v116 = vshrl.u32 %v115, 7
  %v117 = vsub.s32 %v114, %v116
  %v118 = vrot.slane %v107, %v117
  %v120 = vunpack.c.l.s4 839922192
  %v121 = vunpack.c.0.s8 %v120
  %v122 = vlaneseq
  %v123 = vshrl.u32 %v122, 7
  %v124 = vsub.s32 %v121, %v123
  %v125 = vrot.slane %v111, %v124
  %v128 = vadd.f32 %v102, %v118
  %v129 = vadd.f32 %v103, %v125
  %130 = vst [vmem:[%s3] sm:$0xff] %v128
  %131 = vst [vmem:[%s3 + $0x8] sm:$0xff] %v129
  // Predicated region
  $region14: #{conditional_batch_norm_2d.1} parent=0 // pred_check
    _
  $region15: #{conditional_batch_norm_2d.1} parent=0 // pred_check_branch
    %133 = sbr.rel (0) target = $region17
  $region16: #{conditional_batch_norm_2d.1} parent=0 // pred_region
    _
  $region17: #{conditional_batch_norm_2d.1} parent=0 // pred_fallthru
    _
  // Predicated region
  $region18: #{conditional_batch_norm_2d.1} parent=0 // pred_check
    _
  $region19: #{conditional_batch_norm_2d.1} parent=0 // pred_check_branch
    %135 = sbr.rel (0) target = $region21
  $region20: #{conditional_batch_norm_2d.1} parent=0 // pred_region
    _
  $region21: #{conditional_batch_norm_2d.1} parent=0 // pred_fallthru
    _

</llo_original>
